<compile_context>
chip_gen: v7x
topology: tpu7x:2x2x1
jax: 0.10.0
libtpu: 0.0.40
codegen_flags: <defaults>
</compile_context>

<pallas_src>
import math

import jax
import jax.numpy as jnp
from jax import lax
from jax.experimental import pallas as pl
from jax.experimental.pallas import tpu as pltpu

_MiB = 1024 * 1024


def _round_up(x, m):
    return (x + m - 1) // m * m


def _cdiv(a, b):
    return (a + b - 1) // b


def _device_kind():
    try:
        return jax.devices()[0].device_kind.lower()
    except Exception:
        return ""


def _physical_vmem_bytes():
    kind = _device_kind()
    if "7" in kind:                       # v7x: 64 MiB VMEM per TensorCore
        return 64 * _MiB
    if any(("v%d" % g) in kind for g in (3, 4, 5, 6)):
        return 128 * _MiB                 # v3..v6e: 128 MiB
    return 64 * _MiB                      # unknown: be conservative


def _has_two_tensorcores():
    return "7" in _device_kind()          # v7x: 2 TCs per chip


# ----------------------------- kernels ------------------------------------


def _linear_bias_kernel(x_ref, w_ref, b_ref, o_ref, acc_ref):
    # x_ref:   (tm, tk)   activation tile
    # w_ref:   (tn, tk)   weight tile, PyTorch (out_dim, in_dim) layout
    # b_ref:   (1,  tn)   bias slice for this N tile
    # o_ref:   (tm, tn)   output tile
    # acc_ref: (tm, tn)   f32 accumulator, resident across the K grid axis
    k = pl.program_id(2)

    @pl.when(k == 0)
    def _():
        acc_ref[...] = jnp.zeros_like(acc_ref)

    # x @ W^T without materializing a transpose: contract the K axis of both
    # operands; the MXU handles the transposed operand directly.
    acc_ref[...] += lax.dot_general(
        x_ref[...],
        w_ref[...],
        dimension_numbers=(((1,), (1,)), ((), ())),
        preferred_element_type=jnp.float32,
    )

    @pl.when(k == pl.num_programs(2) - 1)
    def _():
        # Bias added exactly once per output tile, in the finalize branch.
        o_ref[...] = (acc_ref[...] + b_ref[...]).astype(o_ref.dtype)


def _linear_nobias_kernel(x_ref, w_ref, o_ref, acc_ref):
    k = pl.program_id(2)

    @pl.when(k == 0)
    def _():
        acc_ref[...] = jnp.zeros_like(acc_ref)

    acc_ref[...] += lax.dot_general(
        x_ref[...],
        w_ref[...],
        dimension_numbers=(((1,), (1,)), ((), ())),
        preferred_element_type=jnp.float32,
    )

    @pl.when(k == pl.num_programs(2) - 1)
    def _():
        o_ref[...] = acc_ref[...].astype(o_ref.dtype)


# ----------------------------- wrapper -------------------------------------


class PallasLinear:
    """y = x @ W^T + b with W kept in PyTorch (out_dim, in_dim) layout.

    Weight / bias padding to tile multiples happens ONCE here, not per call.
    """

    def __init__(self, weight, bias=None, tm_cap=512):
        self.out_dim, self.in_dim = weight.shape
        self.dtype = weight.dtype
        self.itemsize = jnp.dtype(self.dtype).itemsize
        self.sublane = 16 if self.itemsize == 2 else 8
        self.vmem_bytes = _physical_vmem_bytes()
        self.two_tc = _has_two_tensorcores()
        self.tm_cap = tm_cap

        # N / K tile sizes (generation-aware).  v6e/v7x MXU passes are
        # 256-wide, so keep tn/tk multiples of 256 when the true dim allows;
        # bigger tk amortizes per-grid-step overhead and the accumulator RMW
        # (important on v5e's single vst slot).  Larger tk caps on the
        # 128-MiB-VMEM chips (v5e/v6e).
        def lane_gran(d):
            return 256 if d >= 256 else 128

        big_vmem = self.vmem_bytes >= 96 * _MiB
        tn_cap = 512
        tk_cap = 2048 if self.itemsize == 2 else 1024
        if big_vmem:
            tk_cap *= 2

        self.tn = min(tn_cap, _round_up(self.out_dim, lane_gran(self.out_dim)))
        self.tk = min(tk_cap, _round_up(self.in_dim, lane_gran(self.in_dim)))
        self.np_ = _round_up(self.out_dim, self.tn)
        self.kp = _round_up(self.in_dim, self.tk)

        # One-time weight / bias padding (K padding contributes 0 to the dot,
        # N padding is sliced off the output).
        w = weight
        if (self.np_, self.kp) != (self.out_dim, self.in_dim):
            w = jnp.pad(weight, ((0, self.np_ - self.out_dim),
                                 (0, self.kp - self.in_dim)))
        self.w_p = w

        self.has_bias = bias is not None
        if self.has_bias:
            b = bias.reshape(1, self.out_dim).astype(self.dtype)
            if self.np_ != self.out_dim:
                b = jnp.pad(b, ((0, 0), (0, self.np_ - self.out_dim)))
            self.b_p = b
        else:
            self.b_p = None

    def _pick_tm(self, m):
        sub = self.sublane
        tm = min(self.tm_cap, _round_up(m, sub))
        if m > tm:
            # Minimize M padding: fewest blocks, sublane-rounded block size.
            n_blk = _cdiv(m, tm)
            tm = _round_up(_cdiv(m, n_blk), sub)
        return tm

    def __call__(self, x):
        assert x.shape[-1] == self.in_dim
        lead_shape = x.shape[:-1]
        m = int(math.prod(lead_shape)) if lead_shape else 1

        tm = self._pick_tm(m)
        mp = _round_up(m, tm)
        tn, tk, np_, kp = self.tn, self.tk, self.np_, self.kp

        # v7x has 2 TensorCores: keep at least one "parallel" grid axis with
        # >= 2 blocks so the second core isn't idle.
        if (self.two_tc and mp // tm == 1 and np_ // tn == 1
                and m >= 2 * self.sublane):
            tm = _round_up(_cdiv(m, 2), self.sublane)
            mp = _round_up(m, tm)

        x2d = x.reshape(m, self.in_dim)
        if (mp, kp) != (m, self.in_dim):
            x2d = jnp.pad(x2d, ((0, mp - m), (0, kp - self.in_dim)))

        grid = (mp // tm, np_ // tn, kp // tk)
        itemsize = self.itemsize

        cost = pl.CostEstimate(
            flops=2 * m * self.out_dim * self.in_dim,
            transcendentals=0,
            bytes_accessed=(mp * kp * (np_ // tn)        # X re-read per N tile
                            + np_ * kp * (mp // tm)      # W re-read per M tile
                            + (np_ if self.has_bias else 0)
                            + mp * np_) * itemsize,
        )

        # Double-buffered x / w / (bias) / out tiles + resident f32 acc.
        live_bytes = (2 * (tm * tk + tn * tk + tm * tn) * itemsize
                      + (2 * tn * itemsize if self.has_bias else 0)
                      + tm * tn * 4)
        vmem_limit = int(min(max(2 * live_bytes, 32 * _MiB),
                             (3 * self.vmem_bytes) // 4))

        if self.has_bias:
            kernel = _linear_bias_kernel
            in_specs = [
                pl.BlockSpec((tm, tk), lambda i, j, k: (i, k)),   # x
                pl.BlockSpec((tn, tk), lambda i, j, k: (j, k)),   # W (out, in)
                pl.BlockSpec((1, tn), lambda i, j, k: (0, j)),    # bias
            ]
            operands = (x2d, self.w_p, self.b_p)
        else:
            kernel = _linear_nobias_kernel
            in_specs = [
                pl.BlockSpec((tm, tk), lambda i, j, k: (i, k)),
                pl.BlockSpec((tn, tk), lambda i, j, k: (j, k)),
            ]
            operands = (x2d, self.w_p)

        out = pl.pallas_call(
            kernel,
            out_shape=jax.ShapeDtypeStruct((mp, np_), x.dtype),
            grid_spec=pltpu.PrefetchScalarGridSpec(
                num_scalar_prefetch=0,
                grid=grid,
                in_specs=in_specs,
                out_specs=pl.BlockSpec((tm, tn), lambda i, j, k: (i, j)),
                scratch_shapes=[pltpu.VMEM((tm, tn), jnp.float32)],
            ),
            compiler_params=pltpu.CompilerParams(
                dimension_semantics=("parallel", "parallel", "arbitrary"),
                vmem_limit_bytes=vmem_limit,
            ),
            cost_estimate=cost,
        )(*operands)

        # Skip the post-kernel slice copy when no padding was applied.
        if (mp, np_) != (m, self.out_dim):
            out = out[:m, :self.out_dim]
        return out.reshape(*lead_shape, self.out_dim)


def linear_pallas(x, weight, bias=None):
    """One-shot convenience wrapper.  For repeated calls, construct
    PallasLinear once so the weight padding isn't repeated per call."""
    return PallasLinear(weight, bias)(x)


def xavier_uniform(key, out_dim, in_dim, gain=1.0, dtype=jnp.float32):
    # matches torch.nn.init.xavier_uniform_ on a (out_dim, in_dim) weight
    bound = gain * math.sqrt(6.0 / (in_dim + out_dim))
    return jax.random.uniform(key, (out_dim, in_dim), dtype=dtype,
                              minval=-bound, maxval=bound)


if __name__ == "__main__":
    key = jax.random.PRNGKey(0)
    k_x, k_w, k_b = jax.random.split(key, 3)

    batch, seq, in_dim, out_dim = 2, 8, 32, 32  # M = batch*seq = 16

    x = jax.random.normal(k_x, (batch, seq, in_dim), dtype=jnp.float32)
    # gain = nn.init.calculate_gain('linear') = 1.0
    weight = xavier_uniform(k_w, out_dim, in_dim, gain=1.0)
    # nn.Linear default bias init: U(-1/sqrt(fan_in), 1/sqrt(fan_in))
    b_bound = 1.0 / math.sqrt(in_dim)
    bias = jax.random.uniform(k_b, (out_dim,), dtype=jnp.float32,
                              minval=-b_bound, maxval=b_bound)

    layer = PallasLinear(weight, bias)   # weight padded once, here
    y = layer(x)
    jax.block_until_ready(y)

    # correctness check against plain-JAX reference
    y_ref = x @ weight.T + bias
    assert y.shape == (batch, seq, out_dim)
    assert jnp.allclose(y, y_ref, atol=1e-5, rtol=1e-5)

    # also exercise the bias-free kernel variant
    layer_nb = PallasLinear(weight, None)
    y_nb = layer_nb(x)
    jax.block_until_ready(y_nb)
    assert jnp.allclose(y_nb, x @ weight.T, atol=1e-5, rtol=1e-5)

    print("KERNEL_OK")
</pallas_src>

<mosaic_0001>
module attributes {stable_mosaic.version = 11 : i64} {
  func.func @_linear_bias_kernel(%arg0: i32, %arg1: i32, %arg2: i32, %arg3: memref<16x128xf32, #tpu.memory_space<vmem>>, %arg4: memref<128x128xf32, #tpu.memory_space<vmem>>, %arg5: memref<1x128xf32, #tpu.memory_space<vmem>>, %arg6: memref<16x128xf32, #tpu.memory_space<vmem>>, %arg7: memref<16x128xf32, #tpu.memory_space<vmem>>) attributes {dimension_semantics = [#tpu.dimension_semantics<parallel>, #tpu.dimension_semantics<parallel>, #tpu.dimension_semantics<arbitrary>], iteration_bounds = array<i64: 1, 1, 1>, scalar_prefetch = 0 : i64, scratch_operands = 1 : i64, tpu.core_type = #tpu.core_type<tc>, window_params = [{transform_indices = @transform_0, window_bounds = array<i64: 16, 128>}, {transform_indices = @transform_1, window_bounds = array<i64: 128, 128>}, {transform_indices = @transform_2, window_bounds = array<i64: 1, 128>}, {transform_indices = @transform_3, window_bounds = array<i64: 16, 128>}]} {
    %c0_i32 = arith.constant 0 : i32
    %0 = arith.cmpi eq, %arg2, %c0_i32 : i32
    %1 = arith.extui %0 : i1 to i32
    %c0_i32_0 = arith.constant 0 : i32
    %2 = arith.cmpi ne, %1, %c0_i32_0 : i32
    scf.if %2 {
      %cst_10 = arith.constant 0.000000e+00 : f32
      %12 = vector.broadcast %cst_10 : f32 to vector<16x128xf32>
      %c0_11 = arith.constant 0 : index
      %c0_12 = arith.constant 0 : index
      %13 = vector.load %arg7[%c0_11, %c0_12] : memref<16x128xf32, #tpu.memory_space<vmem>>, vector<16x128xf32>
      tpu.vector_store %arg7[%c0_11, %c0_12], %12 {strides = array<i32>} : memref<16x128xf32, #tpu.memory_space<vmem>>, vector<16x128xf32>,
    } else {
    }
    %c0 = arith.constant 0 : index
    %c0_1 = arith.constant 0 : index
    %3 = vector.load %arg7[%c0, %c0_1] : memref<16x128xf32, #tpu.memory_space<vmem>>, vector<16x128xf32>
    %c0_2 = arith.constant 0 : index
    %c0_3 = arith.constant 0 : index
    %4 = vector.load %arg3[%c0_2, %c0_3] : memref<16x128xf32, #tpu.memory_space<vmem>>, vector<16x128xf32>
    %c0_4 = arith.constant 0 : index
    %c0_5 = arith.constant 0 : index
    %5 = vector.load %arg4[%c0_4, %c0_5] : memref<128x128xf32, #tpu.memory_space<vmem>>, vector<128x128xf32>
    %cst = arith.constant dense<0.000000e+00> : vector<16x128xf32>
    %6 = tpu.matmul %4, %5, %cst {dimension_numbers = #tpu.dot_dimension_numbers<[1], [1], [0], [0], [0, 0, 1, 0], [], []>} : vector<16x128xf32>, vector<128x128xf32>, vector<16x128xf32> -> vector<16x128xf32>
    %7 = arith.addf %3, %6 : vector<16x128xf32>
    %c0_6 = arith.constant 0 : index
    %c0_7 = arith.constant 0 : index
    %8 = vector.load %arg7[%c0_6, %c0_7] : memref<16x128xf32, #tpu.memory_space<vmem>>, vector<16x128xf32>
    tpu.vector_store %arg7[%c0_6, %c0_7], %7 {strides = array<i32>} : memref<16x128xf32, #tpu.memory_space<vmem>>, vector<16x128xf32>,
    %c0_i32_8 = arith.constant 0 : i32
    %9 = arith.cmpi eq, %arg2, %c0_i32_8 : i32
    %10 = arith.extui %9 : i1 to i32
    %c0_i32_9 = arith.constant 0 : i32
    %11 = arith.cmpi ne, %10, %c0_i32_9 : i32
    scf.if %11 {
      %c0_10 = arith.constant 0 : index
      %c0_11 = arith.constant 0 : index
      %12 = vector.load %arg7[%c0_10, %c0_11] : memref<16x128xf32, #tpu.memory_space<vmem>>, vector<16x128xf32>
      %c0_12 = arith.constant 0 : index
      %c0_13 = arith.constant 0 : index
      %13 = vector.load %arg5[%c0_12, %c0_13] : memref<1x128xf32, #tpu.memory_space<vmem>>, vector<1x128xf32>
      %14 = vector.broadcast %13 : vector<1x128xf32> to vector<16x128xf32>
      %15 = arith.addf %12, %14 : vector<16x128xf32>
      %c0_14 = arith.constant 0 : index
      %c0_15 = arith.constant 0 : index
      %16 = vector.load %arg6[%c0_14, %c0_15] : memref<16x128xf32, #tpu.memory_space<vmem>>, vector<16x128xf32>
      tpu.vector_store %arg6[%c0_14, %c0_15], %15 {strides = array<i32>} : memref<16x128xf32, #tpu.memory_space<vmem>>, vector<16x128xf32>,
    } else {
    }
    return
  }
  func.func @transform_0(%arg0: i32, %arg1: i32, %arg2: i32) -> (i32, i32) {
    %c0_i32 = arith.constant 0 : i32
    return %arg0, %arg2 : i32, i32
  }
  func.func @transform_1(%arg0: i32, %arg1: i32, %arg2: i32) -> (i32, i32) {
    %c0_i32 = arith.constant 0 : i32
    return %arg1, %arg2 : i32, i32
  }
  func.func @transform_2(%arg0: i32, %arg1: i32, %arg2: i32) -> (i32, i32) {
    %c0_i32 = arith.constant 0 : i32
    %c0_i32_0 = arith.constant 0 : i32
    return %c0_i32, %arg1 : i32, i32
  }
  func.func @transform_3(%arg0: i32, %arg1: i32, %arg2: i32) -> (i32, i32) {
    %c0_i32 = arith.constant 0 : i32
    return %arg0, %arg1 : i32, i32
  }
}

</mosaic_0001>

<llo_original>
// kernel: tpu_custom_call.1
$region0: #{tpu_custom_call.1}
  #allocation0 [shape = 'u32[]', space=smem, size = 0x4, offset = 0x4, fixed_abs, tag = 'smem constant byte address 0x4 - core index']
  #allocation1 [shape = 'u32[144,128]{1,0:T(1,128)}', space=vmem, size = 0x12000, scoped, tag = 'internal scratch']
  #allocation2 [shape = 'f32[16,128]{1,0:T(8,128)}', space=vmem, size = 0x2000, scoped, tag = 'scratch operand']
  %s0 = inlined_call_operand.hbm [shape: f32[16,128], index: 0, kind: input, shape index: {}]
  %s1 = inlined_call_operand.hbm [shape: f32[128,128], index: 1, kind: input, shape index: {}]
  %s2 = inlined_call_operand.vmem [shape: f32[1,128], index: 2, kind: input, shape index: {}]
  %s3 = inlined_call_operand.hbm [shape: f32[16,128], index: 3, kind: output, shape index: {}]
  %s4 = sld [smem:[#allocation0]]
  $region38: #{tpu_custom_call.1} parent=0
    _
  %s6 = ssub.s32 1, %s4
  %s7 = scalar_select 0, %s6, %s4
  $region1: #{tpu_custom_call.1} parent=0
    #allocation3 [shape = 'u8[8192]{0}', space=vmem, size = 0x2000, scoped, tag = 'input window, operand 0, single buffered']
    #allocation4 [shape = 's32[1]{0}', space=sflag, size = 0x4, scoped, tag = 'scoped memory for tpu_custom_call.1']
    #allocation5 [shape = 's32[1]{0}', space=sflag, size = 0x4, scoped, tag = 'scoped memory for tpu_custom_call.1']
    #allocation6 [shape = 'u8[65536]{0}', space=vmem, size = 0x10000, scoped, tag = 'input window, operand 1, single buffered']
    #allocation7 [shape = 's32[1]{0}', space=sflag, size = 0x4, scoped, tag = 'scoped memory for tpu_custom_call.1']
    #allocation8 [shape = 'u8[8192]{0}', space=vmem, size = 0x2000, scoped, tag = 'output window, operand 0, single buffered']
    %8 = vsyncpa [#allocation4], 0
    %9 = vsyncpa [#allocation7], 0
    %10 = vsyncpa [#allocation5], 0
    // Predicated region
    $region2: #{tpu_custom_call.1} parent=1 // pred_check
      _
    $region3: #{tpu_custom_call.1} parent=1 // pred_check_branch
      %12 = sbr.rel (0) target = $region5
    $region4: #{tpu_custom_call.1} parent=1 // pred_region
      %s14 = ssub.s32 256, 256
      %15 = vsyncadd [#allocation4], %s14
      %s16 = sshll.u32 [#allocation3], 4
      %s17 = int_to_ptr.vmem [resolvable:$true] %s16
      %22 = dma.hbm_to_vmem [thread:$0]  %s0, 256, %s17, [#allocation4], 128, 128, 8
    $region5: #{tpu_custom_call.1} parent=1 // pred_fallthru
      _
    // Predicated region
    $region6: #{tpu_custom_call.1} parent=1 // pred_check
      _
    $region7: #{tpu_custom_call.1} parent=1 // pred_check_branch
      %24 = sbr.rel (0) target = $region9
    $region8: #{tpu_custom_call.1} parent=1 // pred_region
      %s26 = ssub.s32 2048, 2048
      %27 = vsyncadd [#allocation7], %s26
      %s28 = sshll.u32 [#allocation6], 4
      %s29 = int_to_ptr.vmem [resolvable:$true] %s28
      %34 = dma.hbm_to_vmem [thread:$0]  %s1, 2048, %s29, [#allocation7], 128, 128, 8
    $region9: #{tpu_custom_call.1} parent=1 // pred_fallthru
      _
    // Predicated region
    $region10: #{tpu_custom_call.1} parent=1 // pred_check
      _
    $region11: #{tpu_custom_call.1} parent=1 // pred_check_branch
      %36 = sbr.rel (0) target = $region13
    $region12: #{tpu_custom_call.1} parent=1 // pred_region
      _
    $region13: #{tpu_custom_call.1} parent=1 // pred_fallthru
      _
    // Predicated region
    $region14: #{tpu_custom_call.1} parent=1 // pred_check
      _
    $region15: #{tpu_custom_call.1} parent=1 // pred_check_branch
      %38 = sbr.rel (0) target = $region17
    $region16: #{tpu_custom_call.1} parent=1 // pred_region
      %39 = dma.done [#allocation4], 256
    $region17: #{tpu_custom_call.1} parent=1 // pred_fallthru
      _
    // Predicated region
    $region18: #{tpu_custom_call.1} parent=1 // pred_check
      _
    $region19: #{tpu_custom_call.1} parent=1 // pred_check_branch
      %41 = sbr.rel (0) target = $region21
    $region20: #{tpu_custom_call.1} parent=1 // pred_region
      %42 = dma.done [#allocation7], 2048
    $region21: #{tpu_custom_call.1} parent=1 // pred_fallthru
      _
    %p43 = scmp.eq.s32.totalorder 0, 0
    // Predicated region
    $region22: #{tpu_custom_call.1} parent=1 // pred_check
      %p44 = pneg %p43
    $region23: #{tpu_custom_call.1} parent=1 // pred_check_branch
      %46 = sbr.rel (%p44) target = $region25
    $region24: #{tpu_custom_call.1} parent=1 // pred_region
      %47 = vst [vmem:[#allocation2] sm:$0xff] 0.0
      %48 = vst [vmem:[#allocation2 + $0x8] sm:$0xff] 0.0
    $region25: #{tpu_custom_call.1} parent=1 // pred_fallthru
      _
    %v49 = vld [vmem:[#allocation2] sm:$0xff]
    %v50 = vld [vmem:[#allocation2 + $0x8] sm:$0xff]
    %v51 = vld [vmem:[#allocation3] sm:$0xff]
    %v52 = vld [vmem:[#allocation3 + $0x8] sm:$0xff]
    %v53 = vld [vmem:[#allocation6] sm:$0xff]
    %v54 = vld [vmem:[#allocation6 + $0x8] sm:$0xff]
    %v55 = vld [vmem:[#allocation6 + $0x10] sm:$0xff]
    %v56 = vld [vmem:[#allocation6 + $0x18] sm:$0xff]
    %v57 = vld [vmem:[#allocation6 + $0x20] sm:$0xff]
    %v58 = vld [vmem:[#allocation6 + $0x28] sm:$0xff]
    %v59 = vld [vmem:[#allocation6 + $0x30] sm:$0xff]
    %v60 = vld [vmem:[#allocation6 + $0x38] sm:$0xff]
    %v61 = vld [vmem:[#allocation6 + $0x40] sm:$0xff]
    %v62 = vld [vmem:[#allocation6 + $0x48] sm:$0xff]
    %v63 = vld [vmem:[#allocation6 + $0x50] sm:$0xff]
    %v64 = vld [vmem:[#allocation6 + $0x58] sm:$0xff]
    %v65 = vld [vmem:[#allocation6 + $0x60] sm:$0xff]
    %v66 = vld [vmem:[#allocation6 + $0x68] sm:$0xff]
    %v67 = vld [vmem:[#allocation6 + $0x70] sm:$0xff]
    %v68 = vld [vmem:[#allocation6 + $0x78] sm:$0xff]
    %69 = vmatprep.subr.mxu0 0.0
    %70 = vmatpush1.xpose.msra.mxu0 %v53
    %71 = vmatprep.subr.mxu0 0.0
    %72 = vmatpush1.xpose.msra.mxu0 %v54
    %73 = vmatprep.subr.mxu0 0.0
    %74 = vmatpush1.xpose.msra.mxu0 %v55
    %75 = vmatprep.subr.mxu0 0.0
    %76 = vmatpush1.xpose.msra.mxu0 %v56
    %77 = vmatprep.subr.mxu0 0.0
    %78 = vmatpush1.xpose.msra.mxu0 %v57
    %79 = vmatprep.subr.mxu0 0.0
    %80 = vmatpush1.xpose.msra.mxu0 %v58
    %81 = vmatprep.subr.mxu0 0.0
    %82 = vmatpush1.xpose.msra.mxu0 %v59
    %83 = vmatprep.subr.mxu0 0.0
    %84 = vmatpush1.xpose.msra.mxu0 %v60
    %85 = vmatprep.subr.mxu0 0.0
    %86 = vmatpush1.xpose.msra.mxu0 %v61
    %87 = vmatprep.subr.mxu0 0.0
    %88 = vmatpush1.xpose.msra.mxu0 %v62
    %89 = vmatprep.subr.mxu0 0.0
    %90 = vmatpush1.xpose.msra.mxu0 %v63
    %91 = vmatprep.subr.mxu0 0.0
    %92 = vmatpush1.xpose.msra.mxu0 %v64
    %93 = vmatprep.subr.mxu0 0.0
    %94 = vmatpush1.xpose.msra.mxu0 %v65
    %95 = vmatprep.subr.mxu0 0.0
    %96 = vmatpush1.xpose.msra.mxu0 %v66
    %97 = vmatprep.subr.mxu0 0.0
    %98 = vmatpush1.xpose.msra.mxu0 %v67
    %99 = vmatprep.subr.mxu0 0.0
    %100 = vmatpush1.xpose.msra.mxu0 %v68
    %101 = vmatprep.subr.mxu0 0.0
    %102 = vmatpush1.xpose.msra.mxu0 0.0
    %103 = vmatprep.subr.mxu0 0.0
    %104 = vmatpush1.xpose.msra.mxu0 0.0
    %105 = vmatprep.subr.mxu0 0.0
    %106 = vmatpush1.xpose.msra.mxu0 0.0
    %107 = vmatprep.subr.mxu0 0.0
    %108 = vmatpush1.xpose.msra.mxu0 0.0
    %109 = vmatprep.subr.mxu0 0.0
    %110 = vmatpush1.xpose.msra.mxu0 0.0
    %111 = vmatprep.subr.mxu0 0.0
    %112 = vmatpush1.xpose.msra.mxu0 0.0
    %113 = vmatprep.subr.mxu0 0.0
    %114 = vmatpush1.xpose.msra.mxu0 0.0
    %115 = vmatprep.subr.mxu0 0.0
    %116 = vmatpush1.xpose.msra.mxu0 0.0
    %117 = vmatprep.subr.mxu0 0.0
    %118 = vmatpush1.xpose.msra.mxu0 0.0
    %119 = vmatprep.subr.mxu0 0.0
    %120 = vmatpush1.xpose.msra.mxu0 0.0
    %121 = vmatprep.subr.mxu0 0.0
    %122 = vmatpush1.xpose.msra.mxu0 0.0
    %123 = vmatprep.subr.mxu0 0.0
    %124 = vmatpush1.xpose.msra.mxu0 0.0
    %125 = vmatprep.subr.mxu0 0.0
    %126 = vmatpush1.xpose.msra.mxu0 0.0
    %127 = vmatprep.subr.mxu0 0.0
    %128 = vmatpush1.xpose.msra.mxu0 0.0
    %129 = vmatprep.subr.mxu0 0.0
    %130 = vmatpush1.xpose.msra.mxu0 0.0
    %131 = vmatprep.subr.mxu0 0.0
    %132 = vmatpush1.xpose.msra.mxu0 0.0
    %133 = vmatprep.mubr.f32.mxu0 0.0
    %134 = vmatmul.mubr.f32.gmra.mrb[0].mxu0 %v51
    %v135 = vpop.f32.mrb[0].mxu0
    %v136 = vadd.f32 0.0, %v135
    %v137 = vpop.f32.mrb[0].mxu0
    %138 = vmatprep.mubr.f32.mxu0 0.0
    %139 = vmatmul.mubr.f32.gmra.mrb[0].mxu0 %v52
    %v140 = vpop.f32.mrb[0].mxu0
    %v141 = vadd.f32 0.0, %v140
    %v142 = vpop.f32.mrb[0].mxu0
    %143 = vdwg.mxu0
    %v144 = vadd.f32 %v49, %v136
    %v145 = vadd.f32 %v50, %v141
    %146 = vst [vmem:[#allocation2] sm:$0xff] %v144
    %147 = vst [vmem:[#allocation2 + $0x8] sm:$0xff] %v145
    // Predicated region
    $region26: #{tpu_custom_call.1} parent=1 // pred_check
      %p148 = pneg %p43
    $region27: #{tpu_custom_call.1} parent=1 // pred_check_branch
      %150 = sbr.rel (%p148) target = $region29
    $region28: #{tpu_custom_call.1} parent=1 // pred_region
      %v151 = vld [vmem:[#allocation2] sm:$0xff]
      %v152 = vld [vmem:[#allocation2 + $0x8] sm:$0xff]
      %v153 = vld [vmem:[%s2] sm:$0x1]
      %v155 = vlaneseq
      %v156 = vshrl.u32 %v155, 7
      %v157 = vsub.s32 0, %v156
      %v158 = vrot.slane %v153, %v157
      %v160 = vadd.f32 %v151, %v158
      %v161 = vadd.f32 %v152, %v158
      %162 = vst [vmem:[#allocation8] sm:$0xff] %v160
      %163 = vst [vmem:[#allocation8 + $0x8] sm:$0xff] %v161
    $region29: #{tpu_custom_call.1} parent=1 // pred_fallthru
      _
    // Predicated region
    $region30: #{tpu_custom_call.1} parent=1 // pred_check
      _
    $region31: #{tpu_custom_call.1} parent=1 // pred_check_branch
      %165 = sbr.rel (0) target = $region33
    $region32: #{tpu_custom_call.1} parent=1 // pred_region
      %s167 = ssub.s32 256, 256
      %168 = vsyncadd [#allocation5], %s167
      %s169 = sshll.u32 [#allocation8], 4
      %s170 = int_to_ptr.vmem [resolvable:$true] %s169
      %175 = dma.vmem_to_hbm [thread:$0]  %s170, 256, %s3, [#allocation5], 128, 128, 8
    $region33: #{tpu_custom_call.1} parent=1 // pred_fallthru
      _
    // Predicated region
    $region34: #{tpu_custom_call.1} parent=1 // pred_check
      _
    $region35: #{tpu_custom_call.1} parent=1 // pred_check_branch
      %177 = sbr.rel (0) target = $region37
    $region36: #{tpu_custom_call.1} parent=1 // pred_region
      %178 = dma.done [#allocation5], 256
    $region37: #{tpu_custom_call.1} parent=1 // pred_fallthru
      _
    %179 = vsyncpa [#allocation4], 1
    %180 = vsyncpa [#allocation7], 1
    %181 = vsyncpa [#allocation5], 1

</llo_original>
